<compile_context>
chip_gen: v6e
topology: v6e:2x2x1
jax: 0.10.0
libtpu: 0.0.40
codegen_flags: <defaults>
</compile_context>

<pallas_src>
import math

import jax
import jax.numpy as jnp
from jax import lax
from jax.experimental import pallas as pl
from jax.experimental.pallas import tpu as pltpu

B = 8
QUERY_DIM = 32       # must equal HIDDEN_DIM (residual add + LayerNorm in the module)
CONTEXT_DIM = 16
HIDDEN_DIM = 32
NUM_HEADS = 4
HEAD_DIM = HIDDEN_DIM // NUM_HEADS
LN_EPS = 1e-5        # nn.LayerNorm default


def _fusion_kernel(qf_ref, cf_ref, w_ref, vec_ref, out_ref):
    """out = LayerNorm(qf + cf @ W_fused + b_fused) * gamma + beta.

    vec_ref packs rows [b_fused; gamma; beta] into one (3, H) buffer.
    NOTE: the fold is only valid for kv sequence length == 1 (softmax == 1).
    """
    qf = qf_ref[...]                                       # [tb, H]
    cf = cf_ref[...]                                       # [tb, C]
    b_fused = vec_ref[0:1, :]                              # [1, H]
    gamma = vec_ref[1:2, :]
    beta = vec_ref[2:3, :]

    # Single MXU matmul: context_proj -> v_proj -> out_proj folded into w_ref.
    attn = jnp.dot(cf, w_ref[...], preferred_element_type=jnp.float32) + b_fused

    # TODO(synk): nn.Dropout / attention dropout are identity in eval mode (not modeled).
    res = qf + attn

    # LayerNorm over the hidden dim (kept in f32; fast path on v5e VPU/EUP too).
    mean = jnp.mean(res, axis=-1, keepdims=True)
    var = jnp.mean((res - mean) ** 2, axis=-1, keepdims=True)
    out_ref[...] = ((res - mean) * lax.rsqrt(var + LN_EPS)) * gamma + beta


def feature_fusion(query_features, context_features, params, *, block_b=1024):
    """Pallas forward of FeatureFusionWithCrossAttention (eval semantics)."""
    Bn, H = query_features.shape
    C = context_features.shape[1]

    # Fold the whole linear chain once (host/XLA side, tiny matrices).
    w_fused = params["wcp"] @ params["wv"] @ params["wo"]                       # [C, H]
    b_fused = (params["bcp"] @ params["wv"] + params["bv"]) @ params["wo"] + params["bo"]  # [1, H]
    vecs = jnp.concatenate([b_fused, params["gamma"], params["beta"]], axis=0)  # [3, H]

    # Batch tile: sublane-aligned, as large as the batch allows (VMEM is a non-issue).
    tb = min(block_b, max(8, Bn))
    tb = ((tb + 7) // 8) * 8
    pb = ((Bn + tb - 1) // tb) * tb
    if pb != Bn:
        qf = jnp.pad(query_features, ((0, pb - Bn), (0, 0)))
        cf = jnp.pad(context_features, ((0, pb - Bn), (0, 0)))
    else:
        qf, cf = query_features, context_features

    out = pl.pallas_call(
        _fusion_kernel,
        out_shape=jax.ShapeDtypeStruct((pb, H), jnp.float32),
        grid=(pb // tb,),
        in_specs=[
            pl.BlockSpec((tb, H), lambda i: (i, 0)),   # query features
            pl.BlockSpec((tb, C), lambda i: (i, 0)),   # context features
            pl.BlockSpec((C, H), lambda i: (0, 0)),    # fused weight (resident)
            pl.BlockSpec((3, H), lambda i: (0, 0)),    # [b_fused; gamma; beta]
        ],
        out_specs=pl.BlockSpec((tb, H), lambda i: (i, 0)),
        compiler_params=pltpu.CompilerParams(
            dimension_semantics=("parallel",)),        # v7x: shard batch over both TCs
    )(qf, cf, w_fused, vecs)
    return out[:Bn]


def _xavier_uniform(key, shape, gain=1.0):
    # torch weight layout is [out_features, in_features]
    fan_out, fan_in = shape
    bound = gain * math.sqrt(6.0 / (fan_in + fan_out))
    return jax.random.uniform(key, shape, jnp.float32, -bound, bound)


def init_params(key):
    """Faithful to the torch module init; weights pre-transposed to [in, out]."""
    ks = jax.random.split(key, 4)
    g = 1.0 / math.sqrt(2.0)
    wqp = _xavier_uniform(ks[0], (HIDDEN_DIM, QUERY_DIM), gain=g)      # query_proj
    wcp = _xavier_uniform(ks[1], (HIDDEN_DIM, CONTEXT_DIM), gain=g)    # context_proj
    in_proj = _xavier_uniform(ks[2], (3 * HIDDEN_DIM, HIDDEN_DIM))     # MHA in_proj_weight
    wq, wk, wv = jnp.split(in_proj, 3, axis=0)
    wo = _xavier_uniform(ks[3], (HIDDEN_DIM, HIDDEN_DIM))              # MHA out_proj
    zeros_h = jnp.zeros((1, HIDDEN_DIM), jnp.float32)
    return dict(
        wqp=wqp.T, bqp=zeros_h,
        wcp=wcp.T, bcp=zeros_h,
        wq=wq.T, bq=zeros_h,
        wk=wk.T, bk=zeros_h,
        wv=wv.T, bv=zeros_h,
        wo=wo.T, bo=zeros_h,
        gamma=jnp.ones((1, HIDDEN_DIM), jnp.float32),
        beta=jnp.zeros((1, HIDDEN_DIM), jnp.float32),
    )


def _reference(qf, cf, p):
    """Full (un-folded) module forward in plain JAX: proj -> MHA(seq=1) -> LN."""
    qp = qf @ p["wqp"] + p["bqp"]
    cp = cf @ p["wcp"] + p["bcp"]
    q = qp @ p["wq"] + p["bq"]
    k = cp @ p["wk"] + p["bk"]
    v = cp @ p["wv"] + p["bv"]
    n = qf.shape[0]
    qh = q.reshape(n, NUM_HEADS, HEAD_DIM)
    kh = k.reshape(n, NUM_HEADS, HEAD_DIM)
    vh = v.reshape(n, NUM_HEADS, HEAD_DIM)
    scores = (qh * kh).sum(-1, keepdims=True) / math.sqrt(HEAD_DIM)   # [n, NH, 1]
    attn_w = jax.nn.softmax(scores, axis=-1)                          # == 1 (single key)
    attn = (attn_w * vh).reshape(n, HIDDEN_DIM) @ p["wo"] + p["bo"]
    res = qf + attn
    mean = res.mean(-1, keepdims=True)
    var = ((res - mean) ** 2).mean(-1, keepdims=True)
    return (res - mean) / jnp.sqrt(var + LN_EPS) * p["gamma"] + p["beta"]


if __name__ == "__main__":
    key = jax.random.PRNGKey(0)
    kq, kc, kp, kr = jax.random.split(key, 4)
    query = jax.random.normal(kq, (B, QUERY_DIM), jnp.float32)       # [batch, hidden_dim]
    context = jax.random.normal(kc, (B, CONTEXT_DIM), jnp.float32)   # [batch, context_dim]

    # 1) Torch-faithful init (all biases zero, gamma=1, beta=0).
    params = init_params(kp)
    out = jax.block_until_ready(feature_fusion(query, context, params))
    expected = _reference(query, context, params)
    assert out.shape == (B, HIDDEN_DIM)
    assert jnp.allclose(out, expected, atol=2e-3, rtol=2e-3), "kernel/reference mismatch"

    # 2) Randomized biases/affine params to exercise the bias/affine fold path.
    kr1, kr2, kr3, kr4 = jax.random.split(kr, 4)
    params_rand = dict(params)
    params_rand["bcp"] = 0.1 * jax.random.normal(kr1, (1, HIDDEN_DIM), jnp.float32)
    params_rand["bv"] = 0.1 * jax.random.normal(kr2, (1, HIDDEN_DIM), jnp.float32)
    params_rand["bo"] = 0.1 * jax.random.normal(kr3, (1, HIDDEN_DIM), jnp.float32)
    params_rand["gamma"] = 1.0 + 0.1 * jax.random.normal(kr4, (1, HIDDEN_DIM), jnp.float32)
    params_rand["beta"] = 0.05 * jnp.ones((1, HIDDEN_DIM), jnp.float32)
    out2 = jax.block_until_ready(feature_fusion(query, context, params_rand))
    expected2 = _reference(query, context, params_rand)
    assert jnp.allclose(out2, expected2, atol=2e-3, rtol=2e-3), "kernel/reference mismatch (rand params)"

    print("KERNEL_OK")
</pallas_src>

<mosaic_0001>
module attributes {stable_mosaic.version = 11 : i64} {
  func.func @_fusion_kernel(%arg0: i32, %arg1: memref<8x32xf32, #tpu.memory_space<vmem>>, %arg2: memref<8x16xf32, #tpu.memory_space<vmem>>, %arg3: memref<16x32xf32, #tpu.memory_space<vmem>>, %arg4: memref<3x32xf32, #tpu.memory_space<vmem>>, %arg5: memref<8x32xf32, #tpu.memory_space<vmem>>) attributes {dimension_semantics = [#tpu.dimension_semantics<parallel>], iteration_bounds = array<i64: 1>, scalar_prefetch = 0 : i64, scratch_operands = 0 : i64, tpu.core_type = #tpu.core_type<tc>, window_params = [{transform_indices = @transform_0, window_bounds = array<i64: 8, 32>}, {transform_indices = @transform_1, window_bounds = array<i64: 8, 16>}, {pipeline_mode = #tpu.pipeline_mode<synchronous>, transform_indices = @transform_2, window_bounds = array<i64: 16, 32>}, {pipeline_mode = #tpu.pipeline_mode<synchronous>, transform_indices = @transform_3, window_bounds = array<i64: 3, 32>}, {transform_indices = @transform_4, window_bounds = array<i64: 8, 32>}]} {
    %c0 = arith.constant 0 : index
    %c0_0 = arith.constant 0 : index
    %0 = vector.load %arg1[%c0, %c0_0] : memref<8x32xf32, #tpu.memory_space<vmem>>, vector<8x32xf32>
    %c0_1 = arith.constant 0 : index
    %c0_2 = arith.constant 0 : index
    %1 = vector.load %arg2[%c0_1, %c0_2] : memref<8x16xf32, #tpu.memory_space<vmem>>, vector<8x16xf32>
    %c0_3 = arith.constant 0 : index
    %c0_4 = arith.constant 0 : index
    %2 = vector.load %arg4[%c0_3, %c0_4] : memref<3x32xf32, #tpu.memory_space<vmem>>, vector<1x32xf32>
    %c1 = arith.constant 1 : index
    %c0_5 = arith.constant 0 : index
    %3 = vector.load %arg4[%c1, %c0_5] : memref<3x32xf32, #tpu.memory_space<vmem>>, vector<1x32xf32>
    %c2 = arith.constant 2 : index
    %c0_6 = arith.constant 0 : index
    %4 = vector.load %arg4[%c2, %c0_6] : memref<3x32xf32, #tpu.memory_space<vmem>>, vector<1x32xf32>
    %c0_7 = arith.constant 0 : index
    %c0_8 = arith.constant 0 : index
    %5 = vector.load %arg3[%c0_7, %c0_8] : memref<16x32xf32, #tpu.memory_space<vmem>>, vector<16x32xf32>
    %cst = arith.constant dense<0.000000e+00> : vector<8x32xf32>
    %6 = tpu.matmul %1, %5, %cst {dimension_numbers = #tpu.dot_dimension_numbers<[1], [0], [0], [1], [0, 0, 1, 1], [], []>} : vector<8x16xf32>, vector<16x32xf32>, vector<8x32xf32> -> vector<8x32xf32>
    %7 = vector.broadcast %2 : vector<1x32xf32> to vector<8x32xf32>
    %8 = arith.addf %6, %7 : vector<8x32xf32>
    %9 = arith.addf %0, %8 : vector<8x32xf32>
    %cst_9 = arith.constant dense<0.000000e+00> : vector<8xf32>
    %10 = vector.multi_reduction <add>, %9, %cst_9 [1] : vector<8x32xf32> to vector<8xf32>
    %11 = vector.shape_cast %10 : vector<8xf32> to vector<8x1xf32>
    %cst_10 = arith.constant 3.200000e+01 : f32
    %12 = vector.broadcast %cst_10 : f32 to vector<8x1xf32>
    %13 = arith.divf %11, %12 : vector<8x1xf32>
    %14 = vector.broadcast %13 : vector<8x1xf32> to vector<8x32xf32>
    %15 = arith.subf %9, %14 : vector<8x32xf32>
    %16 = arith.mulf %15, %15 : vector<8x32xf32>
    %cst_11 = arith.constant dense<0.000000e+00> : vector<8xf32>
    %17 = vector.multi_reduction <add>, %16, %cst_11 [1] : vector<8x32xf32> to vector<8xf32>
    %18 = vector.shape_cast %17 : vector<8xf32> to vector<8x1xf32>
    %cst_12 = arith.constant 3.200000e+01 : f32
    %19 = vector.broadcast %cst_12 : f32 to vector<8x1xf32>
    %20 = arith.divf %18, %19 : vector<8x1xf32>
    %21 = vector.broadcast %13 : vector<8x1xf32> to vector<8x32xf32>
    %22 = arith.subf %9, %21 : vector<8x32xf32>
    %cst_13 = arith.constant 9.99999974E-6 : f32
    %23 = vector.broadcast %cst_13 : f32 to vector<8x1xf32>
    %24 = arith.addf %20, %23 : vector<8x1xf32>
    %25 = math.rsqrt %24 : vector<8x1xf32>
    %26 = vector.broadcast %25 : vector<8x1xf32> to vector<8x32xf32>
    %27 = arith.mulf %22, %26 : vector<8x32xf32>
    %28 = vector.broadcast %3 : vector<1x32xf32> to vector<8x32xf32>
    %29 = arith.mulf %27, %28 : vector<8x32xf32>
    %30 = vector.broadcast %4 : vector<1x32xf32> to vector<8x32xf32>
    %31 = arith.addf %29, %30 : vector<8x32xf32>
    %c0_14 = arith.constant 0 : index
    %c0_15 = arith.constant 0 : index
    %32 = vector.load %arg5[%c0_14, %c0_15] : memref<8x32xf32, #tpu.memory_space<vmem>>, vector<8x32xf32>
    tpu.vector_store %arg5[%c0_14, %c0_15], %31 {strides = array<i32>} : memref<8x32xf32, #tpu.memory_space<vmem>>, vector<8x32xf32>,
    return
  }
  func.func @transform_0(%arg0: i32) -> (i32, i32) {
    %c0_i32 = arith.constant 0 : i32
    %c0_i32_0 = arith.constant 0 : i32
    return %arg0, %c0_i32 : i32, i32
  }
  func.func @transform_1(%arg0: i32) -> (i32, i32) {
    %c0_i32 = arith.constant 0 : i32
    %c0_i32_0 = arith.constant 0 : i32
    return %arg0, %c0_i32 : i32, i32
  }
  func.func @transform_2(%arg0: i32) -> (i32, i32) {
    %c0_i32 = arith.constant 0 : i32
    %c0_i32_0 = arith.constant 0 : i32
    %c0_i32_1 = arith.constant 0 : i32
    return %c0_i32, %c0_i32_0 : i32, i32
  }
  func.func @transform_3(%arg0: i32) -> (i32, i32) {
    %c0_i32 = arith.constant 0 : i32
    %c0_i32_0 = arith.constant 0 : i32
    %c0_i32_1 = arith.constant 0 : i32
    return %c0_i32, %c0_i32_0 : i32, i32
  }
  func.func @transform_4(%arg0: i32) -> (i32, i32) {
    %c0_i32 = arith.constant 0 : i32
    %c0_i32_0 = arith.constant 0 : i32
    return %arg0, %c0_i32 : i32, i32
  }
}

</mosaic_0001>

<llo_original>
// kernel: tpu_custom_call.1
$region0: #{tpu_custom_call.1}
  #allocation0 [shape = 'u32[]', space=smem, size = 0x4, offset = 0x4, fixed_abs, tag = 'smem constant byte address 0x4 - core index']
  #allocation1 [shape = 'u32[144,128]{1,0:T(1,128)}', space=vmem, size = 0x12000, scoped, tag = 'internal scratch']
  %s0 = inlined_call_operand.hbm [shape: f32[8,32], index: 0, kind: input, shape index: {}]
  %s1 = inlined_call_operand.hbm [shape: f32[8,16], index: 1, kind: input, shape index: {}]
  %s2 = inlined_call_operand.hbm [shape: f32[16,32], index: 2, kind: input, shape index: {}]
  %s3 = inlined_call_operand.vmem [shape: f32[3,32], index: 3, kind: input, shape index: {}]
  %s4 = inlined_call_operand.hbm [shape: f32[8,32], index: 4, kind: output, shape index: {}]
  %s5 = sld [smem:[#allocation0]]
  $region38: #{tpu_custom_call.1} parent=0
    _
  %s7 = ssub.s32 1, %s5
  %s8 = scalar_select 0, %s7, %s5
  $region1: #{tpu_custom_call.1} parent=0
    #allocation2 [shape = 'u8[4096]{0}', space=vmem, size = 0x1000, scoped, tag = 'input window, operand 0, single buffered']
    #allocation3 [shape = 's32[1]{0}', space=sflag, size = 0x4, scoped, tag = 'scoped memory for tpu_custom_call.1']
    #allocation4 [shape = 's32[1]{0}', space=sflag, size = 0x4, scoped, tag = 'scoped memory for tpu_custom_call.1']
    #allocation5 [shape = 'u8[4096]{0}', space=vmem, size = 0x1000, scoped, tag = 'input window, operand 1, single buffered']
    #allocation6 [shape = 's32[1]{0}', space=sflag, size = 0x4, scoped, tag = 'scoped memory for tpu_custom_call.1']
    #allocation7 [shape = 'u8[8192]{0}', space=vmem, size = 0x2000, scoped, tag = 'input window, operand 2, single buffered']
    #allocation8 [shape = 'u8[4096]{0}', space=vmem, size = 0x1000, scoped, tag = 'output window, operand 0, single buffered']
    %9 = vsyncpa [#allocation3], 0
    %10 = vsyncpa [#allocation6], 0
    %11 = vsyncpa [#allocation4], 0
    // Predicated region
    $region2: #{tpu_custom_call.1} parent=1 // pred_check
      _
    $region3: #{tpu_custom_call.1} parent=1 // pred_check_branch
      %13 = sbr.rel (0) target = $region5
    $region4: #{tpu_custom_call.1} parent=1 // pred_region
      %s15 = ssub.s32 128, 128
      %16 = vsyncadd [#allocation3], %s15
      %s18 = sshll.u32 [#allocation2], 4
      %s19 = int_to_ptr.vmem [resolvable:$true] %s18
      %21 = dma.hbm_to_vmem [thread:$0]  %s0, 128, %s19, [#allocation3]
    $region5: #{tpu_custom_call.1} parent=1 // pred_fallthru
      _
    // Predicated region
    $region6: #{tpu_custom_call.1} parent=1 // pred_check
      _
    $region7: #{tpu_custom_call.1} parent=1 // pred_check_branch
      %23 = sbr.rel (0) target = $region9
    $region8: #{tpu_custom_call.1} parent=1 // pred_region
      %s25 = ssub.s32 128, 128
      %26 = vsyncadd [#allocation6], %s25
      %s28 = sshll.u32 [#allocation5], 4
      %s29 = int_to_ptr.vmem [resolvable:$true] %s28
      %31 = dma.hbm_to_vmem [thread:$0]  %s1, 128, %s29, [#allocation6]
    $region9: #{tpu_custom_call.1} parent=1 // pred_fallthru
      _
    // Predicated region
    $region10: #{tpu_custom_call.1} parent=1 // pred_check
      _
    $region11: #{tpu_custom_call.1} parent=1 // pred_check_branch
      %33 = sbr.rel (0) target = $region13
    $region12: #{tpu_custom_call.1} parent=1 // pred_region
      %s35 = ssub.s32 256, 256
      %36 = vsyncadd [#allocation6], %s35
      %s37 = sshll.u32 [#allocation7], 4
      %s38 = int_to_ptr.vmem [resolvable:$true] %s37
      %43 = dma.hbm_to_vmem [thread:$0]  %s2, 256, %s38, [#allocation6], 128, 128, 8
    $region13: #{tpu_custom_call.1} parent=1 // pred_fallthru
      _
    // Predicated region
    $region14: #{tpu_custom_call.1} parent=1 // pred_check
      _
    $region15: #{tpu_custom_call.1} parent=1 // pred_check_branch
      %45 = sbr.rel (0) target = $region17
    $region16: #{tpu_custom_call.1} parent=1 // pred_region
      _
    $region17: #{tpu_custom_call.1} parent=1 // pred_fallthru
      _
    // Predicated region
    $region18: #{tpu_custom_call.1} parent=1 // pred_check
      _
    $region19: #{tpu_custom_call.1} parent=1 // pred_check_branch
      %47 = sbr.rel (0) target = $region21
    $region20: #{tpu_custom_call.1} parent=1 // pred_region
      %48 = dma.done [#allocation3], 128
    $region21: #{tpu_custom_call.1} parent=1 // pred_fallthru
      _
    // Predicated region
    $region22: #{tpu_custom_call.1} parent=1 // pred_check
      _
    $region23: #{tpu_custom_call.1} parent=1 // pred_check_branch
      %50 = sbr.rel (0) target = $region25
    $region24: #{tpu_custom_call.1} parent=1 // pred_region
      %51 = dma.done [#allocation6], 128
    $region25: #{tpu_custom_call.1} parent=1 // pred_fallthru
      _
    // Predicated region
    $region26: #{tpu_custom_call.1} parent=1 // pred_check
      _
    $region27: #{tpu_custom_call.1} parent=1 // pred_check_branch
      %53 = sbr.rel (0) target = $region29
    $region28: #{tpu_custom_call.1} parent=1 // pred_region
      %54 = dma.done [#allocation6], 256
    $region29: #{tpu_custom_call.1} parent=1 // pred_fallthru
      _
    %v55 = vld [vmem:[#allocation2] sm:$0xff]
    %v56 = vld [vmem:[#allocation5] sm:$0xff]
    %v57 = vld [vmem:[%s3] sm:$0x1]
    %v58 = vld [vmem:[%s3 + $0x1] sm:$0x1]
    %v59 = vld [vmem:[%s3 + $0x2] sm:$0x1]
    %v60 = vld [vmem:[#allocation7] sm:$0xff]
    %v61 = vld [vmem:[#allocation7 + $0x8] sm:$0xff]
    %v62 = vlaneseq
    %v63 = vshrl.u32 %v62, 7
    %v64 = vsub.s32 0, %v63
    %v65 = vrot.slane %v57, %v64
    %vm66 = vcmask 130048
    %v68 = vsel %vm66, %v56, 0
    %70 = vmatprep.subr.mxu0 0.0
    %71 = vmatpush1.msra.mxu0 0.0
    %72 = vmatprep.subr.mxu0 0.0
    %73 = vmatpush1.msra.mxu0 0.0
    %74 = vmatprep.subr.mxu0 0.0
    %75 = vmatpush1.msra.mxu0 0.0
    %76 = vmatprep.subr.mxu0 0.0
    %77 = vmatpush1.msra.mxu0 0.0
    %78 = vmatprep.subr.mxu0 0.0
    %79 = vmatpush1.msra.mxu0 0.0
    %80 = vmatprep.subr.mxu0 0.0
    %81 = vmatpush1.msra.mxu0 0.0
    %82 = vmatprep.subr.mxu0 0.0
    %83 = vmatpush1.msra.mxu0 0.0
    %84 = vmatprep.subr.mxu0 0.0
    %85 = vmatpush1.msra.mxu0 0.0
    %86 = vmatprep.subr.mxu0 0.0
    %87 = vmatpush1.msra.mxu0 0.0
    %88 = vmatprep.subr.mxu0 0.0
    %89 = vmatpush1.msra.mxu0 0.0
    %90 = vmatprep.subr.mxu0 0.0
    %91 = vmatpush1.msra.mxu0 0.0
    %92 = vmatprep.subr.mxu0 0.0
    %93 = vmatpush1.msra.mxu0 0.0
    %94 = vmatprep.subr.mxu0 0.0
    %95 = vmatpush1.msra.mxu0 0.0
    %96 = vmatprep.subr.mxu0 0.0
    %97 = vmatpush1.msra.mxu0 0.0
    %98 = vmatprep.subr.mxu0 0.0
    %99 = vmatpush1.msra.mxu0 %v61
    %100 = vmatprep.subr.mxu0 0.0
    %101 = vmatpush1.msra.mxu0 %v60
    %102 = vmatprep.subr.mxu0 0.0
    %103 = vmatpush2.msra.mxu0 0.0
    %104 = vmatprep.subr.mxu0 0.0
    %105 = vmatpush2.msra.mxu0 0.0
    %106 = vmatprep.subr.mxu0 0.0
    %107 = vmatpush2.msra.mxu0 0.0
    %108 = vmatprep.subr.mxu0 0.0
    %109 = vmatpush2.msra.mxu0 0.0
    %110 = vmatprep.subr.mxu0 0.0
    %111 = vmatpush2.msra.mxu0 0.0
    %112 = vmatprep.subr.mxu0 0.0
    %113 = vmatpush2.msra.mxu0 0.0
    %114 = vmatprep.subr.mxu0 0.0
    %115 = vmatpush2.msra.mxu0 0.0
    %116 = vmatprep.subr.mxu0 0.0
    %117 = vmatpush2.msra.mxu0 0.0
    %118 = vmatprep.subr.mxu0 0.0
    %119 = vmatpush2.msra.mxu0 0.0
    %120 = vmatprep.subr.mxu0 0.0
    %121 = vmatpush2.msra.mxu0 0.0
    %122 = vmatprep.subr.mxu0 0.0
    %123 = vmatpush2.msra.mxu0 0.0
    %124 = vmatprep.subr.mxu0 0.0
    %125 = vmatpush2.msra.mxu0 0.0
    %126 = vmatprep.subr.mxu0 0.0
    %127 = vmatpush2.msra.mxu0 0.0
    %128 = vmatprep.subr.mxu0 0.0
    %129 = vmatpush2.msra.mxu0 0.0
    %130 = vmatprep.subr.mxu0 0.0
    %131 = vmatpush2.msra.mxu0 0.0
    %132 = vmatprep.subr.mxu0 0.0
    %133 = vmatpush2.msra.mxu0 0.0
    %134 = vmatprep.mubr.f32.mxu0 0.0
    %135 = vmatmul.mubr.f32.gmra.mxu0 %v68
    %v136 = vpop.f32.mrf.mxu0
    %v137 = vadd.f32 %v65, %v136
    %v138 = vpop.f32.mrf.mxu0
    %139 = vdwg.mxu0
    %v140 = vadd.f32 %v55, %v137
    %vm141 = vcmask 261120
    %v142 = vsel %vm141, %v140, 0.0
    %143 = vadd.xlane.f32.xlu0 %v142
    %v144 = vpop.xlane.xlu0 %143
    %v145 = vrcp.pop 32.0
    %v146 = vmul.f32 %v144, %v145
    %v147 = vsub.f32 %v140, %v146
    %v148 = vmul.f32 %v147, %v147
    %v149 = vsel %vm141, %v148, 0.0
    %150 = vadd.xlane.f32.xlu0 %v149
    %v151 = vpop.xlane.xlu0 %150
    %v152 = vmul.f32 %v151, %v145
    %v153 = vadd.f32 %v152, 1e-05
    %v154 = vrsqrt.pop %v153
    %v155 = vmul.f32 %v147, %v154
    %v156 = vlaneseq
    %v157 = vshrl.u32 %v156, 7
    %v158 = vsub.s32 0, %v157
    %v159 = vrot.slane %v58, %v158
    %v160 = vmul.f32 %v155, %v159
    %v161 = vlaneseq
    %v162 = vshrl.u32 %v161, 7
    %v163 = vsub.s32 0, %v162
    %v164 = vrot.slane %v59, %v163
    %v165 = vadd.f32 %v160, %v164
    %166 = vst.msk [vmem:[#allocation8] sm:$0xff] %vm141, %v165
    // Predicated region
    $region30: #{tpu_custom_call.1} parent=1 // pred_check
      _
    $region31: #{tpu_custom_call.1} parent=1 // pred_check_branch
      %168 = sbr.rel (0) target = $region33
    $region32: #{tpu_custom_call.1} parent=1 // pred_region
      %s170 = ssub.s32 128, 128
      %171 = vsyncadd [#allocation4], %s170
      %s173 = sshll.u32 [#allocation8], 4
      %s174 = int_to_ptr.vmem [resolvable:$true] %s173
      %176 = dma.vmem_to_hbm [thread:$0]  %s174, 128, %s4, [#allocation4]
    $region33: #{tpu_custom_call.1} parent=1 // pred_fallthru
      _
    // Predicated region
    $region34: #{tpu_custom_call.1} parent=1 // pred_check
      _
    $region35: #{tpu_custom_call.1} parent=1 // pred_check_branch
      %178 = sbr.rel (0) target = $region37
    $region36: #{tpu_custom_call.1} parent=1 // pred_region
      %179 = dma.done [#allocation4], 128
    $region37: #{tpu_custom_call.1} parent=1 // pred_fallthru
      _
    %180 = vsyncpa [#allocation3], 1
    %181 = vsyncpa [#allocation6], 1
    %182 = vsyncpa [#allocation4], 1

</llo_original>
